<compile_context>
chip_gen: v7x
topology: tpu7x:2x2x1
jax: 0.10.0
libtpu: 0.0.40
codegen_flags: <defaults>
</compile_context>

<pallas_src>
import jax
import jax.numpy as jnp
from jax.experimental import pallas as pl
from jax.experimental.pallas import tpu as pltpu


def _round_up(x: int, m: int) -> int:
    return (x + m - 1) // m * m


def _mlp_kernel(w1_ref, b1_ref, w2_ref, b2_ref, x_ref, o_ref):
    # x_ref : (R, P*num_input)  f32   (streamed, lane-dense when P*num_input == 128)
    # w1_ref: (P*num_input, P*hidden)      bf16  (resident, block-diagonal)
    # b1_ref: (1, P*hidden)                f32
    # w2_ref: (P*hidden, P*num_output)     bf16  (resident, block-diagonal)
    # b2_ref: (1, P*num_output)            f32
    # o_ref : (R, P*num_output)            f32
    x = x_ref[...].astype(jnp.bfloat16)                                  # cast in-kernel
    h = jnp.dot(x, w1_ref[...], preferred_element_type=jnp.float32)     # (R, P*hidden) f32
    h = jnp.maximum(h + b1_ref[...], 0.0)                               # bias + ReLU (f32)
    h = h.astype(jnp.bfloat16)
    y = jnp.dot(h, w2_ref[...], preferred_element_type=jnp.float32)     # (R, P*num_out) f32
    y = jnp.maximum(y + b2_ref[...], 0.0)
    o_ref[...] = y.astype(o_ref.dtype)


def net_forward(x, w1, b1, w2, b2, *, tile_rows=None):
    """Forward pass of `Net`.

    x : (B, num_input)        (torch layout)
    w1: (num_input, hidden)   (transposed torch fc1.weight)
    b1: (hidden,) or (1, hidden)
    w2: (hidden, num_output)  (transposed torch fc2.weight)
    b2: (num_output,) or (1, num_output)
    returns (B, num_output) f32
    """
    B, num_input = x.shape
    hidden = w1.shape[1]
    num_output = w2.shape[1]

    # Batch-packing factor: pack P consecutive rows into one 128-lane VMEM row.
    if 1 <= num_input <= 128 and 128 % num_input == 0:
        P = 128 // num_input
    else:
        P = 1  # fallback: natural (B, num_input) layout, still correct

    # Only pad rows if B is not a multiple of P (cheap; usually a no-op).
    Bp = _round_up(max(B, 1), P)
    if Bp != B:
        x = jnp.pad(x, ((0, Bp - B), (0, 0)))
    rows = Bp // P
    xp = jnp.reshape(x, (rows, P * num_input))          # contiguous -> free reshape

    # Block-diagonal expansion of the (tiny) weights so packed rows are independent.
    eye = jnp.eye(P, dtype=jnp.float32)
    w1_big = jnp.kron(eye, w1.astype(jnp.float32)).astype(jnp.bfloat16)
    w2_big = jnp.kron(eye, w2.astype(jnp.float32)).astype(jnp.bfloat16)
    b1_big = jnp.tile(jnp.reshape(b1, (1, hidden)).astype(jnp.float32), (1, P))
    b2_big = jnp.tile(jnp.reshape(b2, (1, num_output)).astype(jnp.float32), (1, P))

    # Tile: ~2 MiB of streamed input per grid step (4096 packed rows = 32768 batch
    # elems when num_input == 16) to amortize the ~0.35 us per-step overhead.
    if tile_rows is None:
        row_bytes = P * num_input * 4
        tile_rows = min(4096, max(8, (2 * 1024 * 1024) // row_bytes))
    tile_rows = min(_round_up(tile_rows, 8), rows)
    grid = (pl.cdiv(rows, tile_rows),)                  # partial last block OK

    out = pl.pallas_call(
        _mlp_kernel,
        out_shape=jax.ShapeDtypeStruct((rows, P * num_output), jnp.float32),
        grid=grid,
        in_specs=[
            pl.BlockSpec((P * num_input, P * hidden), lambda i: (0, 0)),      # W1 (resident)
            pl.BlockSpec((1, P * hidden), lambda i: (0, 0)),                  # b1 (resident)
            pl.BlockSpec((P * hidden, P * num_output), lambda i: (0, 0)),     # W2 (resident)
            pl.BlockSpec((1, P * num_output), lambda i: (0, 0)),              # b2 (resident)
            pl.BlockSpec((tile_rows, P * num_input), lambda i: (i, 0)),       # x  (streamed)
        ],
        out_specs=pl.BlockSpec((tile_rows, P * num_output), lambda i: (i, 0)),
        compiler_params=pltpu.CompilerParams(
            dimension_semantics=("parallel",),       # v7x megacore shards the batch grid
            vmem_limit_bytes=40 * 1024 * 1024,       # ~20 MB actually needed; safe on v5e/v6e/v7x
        ),
    )(w1_big, b1_big, w2_big, b2_big, xp)

    # Free reshape back to row-major (Bp, num_output), cheap leading-dim slice.
    return jnp.reshape(out, (Bp, num_output))[:B]


def init_params(key, num_input, num_output, hidden=8):
    """Deterministic init mimicking torch.nn.Linear default (U(-1/sqrt(fan_in), +))."""
    k1, k2, k3, k4 = jax.random.split(key, 4)
    bound1 = 1.0 / jnp.sqrt(num_input)
    bound2 = 1.0 / jnp.sqrt(hidden)
    # Stored as (in_features, out_features); torch weights would be transposed into this.
    w1 = jax.random.uniform(k1, (num_input, hidden), jnp.float32, -bound1, bound1)
    b1 = jax.random.uniform(k2, (1, hidden), jnp.float32, -bound1, bound1)
    w2 = jax.random.uniform(k3, (hidden, num_output), jnp.float32, -bound2, bound2)
    b2 = jax.random.uniform(k4, (1, num_output), jnp.float32, -bound2, bound2)
    return w1, b1, w2, b2


def _reference(x, w1, b1, w2, b2):
    # Mirrors the kernel's bf16-operand / f32-accumulate behavior.
    xb = x.astype(jnp.bfloat16).astype(jnp.float32)
    w1b = w1.astype(jnp.bfloat16).astype(jnp.float32)
    w2b = w2.astype(jnp.bfloat16).astype(jnp.float32)
    h = jnp.maximum(xb @ w1b + jnp.reshape(b1, (1, -1)), 0.0)
    h = h.astype(jnp.bfloat16).astype(jnp.float32)
    return jnp.maximum(h @ w2b + jnp.reshape(b2, (1, -1)), 0.0)


if __name__ == "__main__":
    num_input, num_output = 16, 4

    key = jax.random.PRNGKey(0)
    kp, kx1, kx2 = jax.random.split(key, 3)
    w1, b1, w2, b2 = init_params(kp, num_input, num_output)

    # Small batch, multiple of the packing factor (no padding path).
    batch = 128
    x = jax.random.normal(kx1, (batch, num_input), jnp.float32)
    out = jax.block_until_ready(net_forward(x, w1, b1, w2, b2))
    ref = _reference(x, w1, b1, w2, b2)
    assert out.shape == (batch, num_output)
    assert jnp.allclose(out, ref, atol=2e-2, rtol=2e-2)

    # Batch not a multiple of the packing factor (exercises pad + slice-back).
    batch2 = 300
    x2 = jax.random.normal(kx2, (batch2, num_input), jnp.float32)
    out2 = jax.block_until_ready(net_forward(x2, w1, b1, w2, b2))
    ref2 = _reference(x2, w1, b1, w2, b2)
    assert out2.shape == (batch2, num_output)
    assert jnp.allclose(out2, ref2, atol=2e-2, rtol=2e-2)

    print("KERNEL_OK")
</pallas_src>

<mosaic_0001>
module attributes {stable_mosaic.version = 11 : i64} {
  func.func @_mlp_kernel(%arg0: i32, %arg1: memref<128x64xbf16, #tpu.memory_space<vmem>>, %arg2: memref<1x64xf32, #tpu.memory_space<vmem>>, %arg3: memref<64x32xbf16, #tpu.memory_space<vmem>>, %arg4: memref<1x32xf32, #tpu.memory_space<vmem>>, %arg5: memref<16x128xf32, #tpu.memory_space<vmem>>, %arg6: memref<16x32xf32, #tpu.memory_space<vmem>>) attributes {dimension_semantics = [#tpu.dimension_semantics<parallel>], iteration_bounds = array<i64: 1>, scalar_prefetch = 0 : i64, scratch_operands = 0 : i64, tpu.core_type = #tpu.core_type<tc>, window_params = [{pipeline_mode = #tpu.pipeline_mode<synchronous>, transform_indices = @transform_0, window_bounds = array<i64: 128, 64>}, {pipeline_mode = #tpu.pipeline_mode<synchronous>, transform_indices = @transform_1, window_bounds = array<i64: 1, 64>}, {pipeline_mode = #tpu.pipeline_mode<synchronous>, transform_indices = @transform_2, window_bounds = array<i64: 64, 32>}, {pipeline_mode = #tpu.pipeline_mode<synchronous>, transform_indices = @transform_3, window_bounds = array<i64: 1, 32>}, {transform_indices = @transform_4, window_bounds = array<i64: 16, 128>}, {transform_indices = @transform_5, window_bounds = array<i64: 16, 32>}]} {
    %c0 = arith.constant 0 : index
    %c0_0 = arith.constant 0 : index
    %0 = vector.load %arg5[%c0, %c0_0] : memref<16x128xf32, #tpu.memory_space<vmem>>, vector<16x128xf32>
    %1 = arith.truncf %0 : vector<16x128xf32> to vector<16x128xbf16>
    %c0_1 = arith.constant 0 : index
    %c0_2 = arith.constant 0 : index
    %2 = vector.load %arg1[%c0_1, %c0_2] : memref<128x64xbf16, #tpu.memory_space<vmem>>, vector<128x64xbf16>
    %cst = arith.constant dense<0.000000e+00> : vector<16x64xf32>
    %3 = tpu.matmul %1, %2, %cst {dimension_numbers = #tpu.dot_dimension_numbers<[1], [0], [0], [1], [0, 0, 1, 1], [], []>} : vector<16x128xbf16>, vector<128x64xbf16>, vector<16x64xf32> -> vector<16x64xf32>
    %c0_3 = arith.constant 0 : index
    %c0_4 = arith.constant 0 : index
    %4 = vector.load %arg2[%c0_3, %c0_4] : memref<1x64xf32, #tpu.memory_space<vmem>>, vector<1x64xf32>
    %5 = vector.broadcast %4 : vector<1x64xf32> to vector<16x64xf32>
    %6 = arith.addf %3, %5 : vector<16x64xf32>
    %cst_5 = arith.constant 0.000000e+00 : f32
    %7 = vector.broadcast %cst_5 : f32 to vector<16x64xf32>
    %8 = arith.maximumf %6, %7 : vector<16x64xf32>
    %9 = arith.truncf %8 : vector<16x64xf32> to vector<16x64xbf16>
    %c0_6 = arith.constant 0 : index
    %c0_7 = arith.constant 0 : index
    %10 = vector.load %arg3[%c0_6, %c0_7] : memref<64x32xbf16, #tpu.memory_space<vmem>>, vector<64x32xbf16>
    %cst_8 = arith.constant dense<0.000000e+00> : vector<16x32xf32>
    %11 = tpu.matmul %9, %10, %cst_8 {dimension_numbers = #tpu.dot_dimension_numbers<[1], [0], [0], [1], [0, 0, 1, 1], [], []>} : vector<16x64xbf16>, vector<64x32xbf16>, vector<16x32xf32> -> vector<16x32xf32>
    %c0_9 = arith.constant 0 : index
    %c0_10 = arith.constant 0 : index
    %12 = vector.load %arg4[%c0_9, %c0_10] : memref<1x32xf32, #tpu.memory_space<vmem>>, vector<1x32xf32>
    %13 = vector.broadcast %12 : vector<1x32xf32> to vector<16x32xf32>
    %14 = arith.addf %11, %13 : vector<16x32xf32>
    %cst_11 = arith.constant 0.000000e+00 : f32
    %15 = vector.broadcast %cst_11 : f32 to vector<16x32xf32>
    %16 = arith.maximumf %14, %15 : vector<16x32xf32>
    %c0_12 = arith.constant 0 : index
    %c0_13 = arith.constant 0 : index
    %17 = vector.load %arg6[%c0_12, %c0_13] : memref<16x32xf32, #tpu.memory_space<vmem>>, vector<16x32xf32>
    tpu.vector_store %arg6[%c0_12, %c0_13], %16 {strides = array<i32>} : memref<16x32xf32, #tpu.memory_space<vmem>>, vector<16x32xf32>,
    return
  }
  func.func @transform_0(%arg0: i32) -> (i32, i32) {
    %c0_i32 = arith.constant 0 : i32
    %c0_i32_0 = arith.constant 0 : i32
    %c0_i32_1 = arith.constant 0 : i32
    return %c0_i32, %c0_i32_0 : i32, i32
  }
  func.func @transform_1(%arg0: i32) -> (i32, i32) {
    %c0_i32 = arith.constant 0 : i32
    %c0_i32_0 = arith.constant 0 : i32
    %c0_i32_1 = arith.constant 0 : i32
    return %c0_i32, %c0_i32_0 : i32, i32
  }
  func.func @transform_2(%arg0: i32) -> (i32, i32) {
    %c0_i32 = arith.constant 0 : i32
    %c0_i32_0 = arith.constant 0 : i32
    %c0_i32_1 = arith.constant 0 : i32
    return %c0_i32, %c0_i32_0 : i32, i32
  }
  func.func @transform_3(%arg0: i32) -> (i32, i32) {
    %c0_i32 = arith.constant 0 : i32
    %c0_i32_0 = arith.constant 0 : i32
    %c0_i32_1 = arith.constant 0 : i32
    return %c0_i32, %c0_i32_0 : i32, i32
  }
  func.func @transform_4(%arg0: i32) -> (i32, i32) {
    %c0_i32 = arith.constant 0 : i32
    %c0_i32_0 = arith.constant 0 : i32
    return %arg0, %c0_i32 : i32, i32
  }
  func.func @transform_5(%arg0: i32) -> (i32, i32) {
    %c0_i32 = arith.constant 0 : i32
    %c0_i32_0 = arith.constant 0 : i32
    return %arg0, %c0_i32 : i32, i32
  }
}

</mosaic_0001>

<llo_original>
// kernel: tpu_custom_call.1
$region0: #{tpu_custom_call.1}
  #allocation0 [shape = 'u32[]', space=smem, size = 0x4, offset = 0x4, fixed_abs, tag = 'smem constant byte address 0x4 - core index']
  #allocation1 [shape = 'u32[144,128]{1,0:T(1,128)}', space=vmem, size = 0x12000, scoped, tag = 'internal scratch']
  %s0 = inlined_call_operand.vmem [shape: bf16[128,64], index: 0, kind: input, shape index: {}]
  %s1 = inlined_call_operand.vmem [shape: f32[1,64], index: 1, kind: input, shape index: {}]
  %s2 = inlined_call_operand.vmem [shape: bf16[64,32], index: 2, kind: input, shape index: {}]
  %s3 = inlined_call_operand.vmem [shape: f32[1,32], index: 3, kind: input, shape index: {}]
  %s4 = inlined_call_operand.vmem [shape: f32[16,128], index: 4, kind: input, shape index: {}]
  %s5 = inlined_call_operand.hbm [shape: f32[16,32], index: 5, kind: output, shape index: {}]
  %s6 = sld [smem:[#allocation0]]
  $region30: #{tpu_custom_call.1} parent=0
    _
  %s8 = ssub.s32 1, %s6
  %s9 = scalar_select 0, %s8, %s6
  $region1: #{tpu_custom_call.1} parent=0
    #allocation2 [shape = 'u8[8192]{0}', space=vmem, size = 0x2000, scoped, tag = 'output window, operand 0, single buffered']
    #allocation3 [shape = 's32[1]{0}', space=sflag, size = 0x4, scoped, tag = 'scoped memory for tpu_custom_call.1']
    %10 = vsyncpa [#allocation3], 0
    // Predicated region
    $region2: #{tpu_custom_call.1} parent=1 // pred_check
      _
    $region3: #{tpu_custom_call.1} parent=1 // pred_check_branch
      %12 = sbr.rel (0) target = $region5
    $region4: #{tpu_custom_call.1} parent=1 // pred_region
      _
    $region5: #{tpu_custom_call.1} parent=1 // pred_fallthru
      _
    // Predicated region
    $region6: #{tpu_custom_call.1} parent=1 // pred_check
      _
    $region7: #{tpu_custom_call.1} parent=1 // pred_check_branch
      %14 = sbr.rel (0) target = $region9
    $region8: #{tpu_custom_call.1} parent=1 // pred_region
      _
    $region9: #{tpu_custom_call.1} parent=1 // pred_fallthru
      _
    // Predicated region
    $region10: #{tpu_custom_call.1} parent=1 // pred_check
      _
    $region11: #{tpu_custom_call.1} parent=1 // pred_check_branch
      %16 = sbr.rel (0) target = $region13
    $region12: #{tpu_custom_call.1} parent=1 // pred_region
      _
    $region13: #{tpu_custom_call.1} parent=1 // pred_fallthru
      _
    // Predicated region
    $region14: #{tpu_custom_call.1} parent=1 // pred_check
      _
    $region15: #{tpu_custom_call.1} parent=1 // pred_check_branch
      %18 = sbr.rel (0) target = $region17
    $region16: #{tpu_custom_call.1} parent=1 // pred_region
      _
    $region17: #{tpu_custom_call.1} parent=1 // pred_fallthru
      _
    // Predicated region
    $region18: #{tpu_custom_call.1} parent=1 // pred_check
      _
    $region19: #{tpu_custom_call.1} parent=1 // pred_check_branch
      %20 = sbr.rel (0) target = $region21
    $region20: #{tpu_custom_call.1} parent=1 // pred_region
      _
    $region21: #{tpu_custom_call.1} parent=1 // pred_fallthru
      _
    %v22 = vld [vmem:[%s4] sm:$0xff]
    %v23 = vld [vmem:[%s4 + $0x8] sm:$0xff]
    %v24 = vpack.c.bf16 %v23, %v22
    %v25 = vld [vmem:[%s0] sm:$0xf]
    %v26 = vld [vmem:[%s0 + $0x4] sm:$0xf]
    %v27 = vld [vmem:[%s0 + $0x8] sm:$0xf]
    %v28 = vld [vmem:[%s0 + $0xc] sm:$0xf]
    %v29 = vld [vmem:[%s0 + $0x10] sm:$0xf]
    %v30 = vld [vmem:[%s0 + $0x14] sm:$0xf]
    %v31 = vld [vmem:[%s0 + $0x18] sm:$0xf]
    %v32 = vld [vmem:[%s0 + $0x1c] sm:$0xf]
    %v33 = vld [vmem:[%s0 + $0x20] sm:$0xf]
    %v34 = vld [vmem:[%s0 + $0x24] sm:$0xf]
    %v35 = vld [vmem:[%s0 + $0x28] sm:$0xf]
    %v36 = vld [vmem:[%s0 + $0x2c] sm:$0xf]
    %v37 = vld [vmem:[%s0 + $0x30] sm:$0xf]
    %v38 = vld [vmem:[%s0 + $0x34] sm:$0xf]
    %v39 = vld [vmem:[%s0 + $0x38] sm:$0xf]
    %v40 = vld [vmem:[%s0 + $0x3c] sm:$0xf]
    %v41 = vld [vmem:[%s1] sm:$0x1]
    %v43 = vlaneseq
    %v44 = vshrl.u32 %v43, 7
    %v45 = vsub.s32 0, %v44
    %v46 = vrot.slane %v41, %v45
    %v64 = vunpack.c.l.b16 %v25
    %v65 = vunpack.c.l.b16 %v26
    %v66 = vunpack.c.l.b16 %v27
    %v67 = vunpack.c.l.b16 %v28
    %v68 = vunpack.c.l.b16 %v29
    %v69 = vunpack.c.l.b16 %v30
    %v70 = vunpack.c.l.b16 %v31
    %v71 = vunpack.c.l.b16 %v32
    %v72 = vunpack.c.l.b16 %v33
    %v73 = vunpack.c.l.b16 %v34
    %v74 = vunpack.c.l.b16 %v35
    %v75 = vunpack.c.l.b16 %v36
    %v76 = vunpack.c.l.b16 %v37
    %v77 = vunpack.c.l.b16 %v38
    %v78 = vunpack.c.l.b16 %v39
    %v79 = vunpack.c.l.b16 %v40
    %v80 = vpack.c.b16 %v65, %v64
    %v81 = vpack.c.b16 %v67, %v66
    %v82 = vpack.c.b16 %v69, %v68
    %v83 = vpack.c.b16 %v71, %v70
    %v84 = vpack.c.b16 %v73, %v72
    %v85 = vpack.c.b16 %v75, %v74
    %v86 = vpack.c.b16 %v77, %v76
    %v87 = vpack.c.b16 %v79, %v78
    %96 = vmatprep.subr.bf16.mxu0 0
    %97 = vmatpush1.bf16.msra.mxu0 %v80
    %98 = vmatprep.subr.bf16.mxu0 0
    %99 = vmatpush1.bf16.msra.mxu0 %v81
    %100 = vmatprep.subr.bf16.mxu0 0
    %101 = vmatpush1.bf16.msra.mxu0 %v82
    %102 = vmatprep.subr.bf16.mxu0 0
    %103 = vmatpush1.bf16.msra.mxu0 %v83
    %104 = vmatprep.subr.bf16.mxu0 0
    %105 = vmatpush1.bf16.msra.mxu0 %v84
    %106 = vmatprep.subr.bf16.mxu0 0
    %107 = vmatpush1.bf16.msra.mxu0 %v85
    %108 = vmatprep.subr.bf16.mxu0 0
    %109 = vmatpush1.bf16.msra.mxu0 %v86
    %110 = vmatprep.subr.bf16.mxu0 0
    %111 = vmatpush1.bf16.msra.mxu0 %v87
    %112 = vmatprep.subr.bf16.mxu0 0
    %113 = vmatpush1.bf16.msra.mxu0 0
    %114 = vmatprep.subr.bf16.mxu0 0
    %115 = vmatpush1.bf16.msra.mxu0 0
    %116 = vmatprep.subr.bf16.mxu0 0
    %117 = vmatpush1.bf16.msra.mxu0 0
    %118 = vmatprep.subr.bf16.mxu0 0
    %119 = vmatpush1.bf16.msra.mxu0 0
    %120 = vmatprep.subr.bf16.mxu0 0
    %121 = vmatpush1.bf16.msra.mxu0 0
    %122 = vmatprep.subr.bf16.mxu0 0
    %123 = vmatpush1.bf16.msra.mxu0 0
    %124 = vmatprep.subr.bf16.mxu0 0
    %125 = vmatpush1.bf16.msra.mxu0 0
    %126 = vmatprep.subr.bf16.mxu0 0
    %127 = vmatpush1.bf16.msra.mxu0 0
    %128 = vmatprep.mubr.bf16.mxu0 0
    %129 = vmatmul.mubr.bf16.gmra.mrb[0].mxu0 %v24
    %v130 = vpop.f32.mrb[0].mxu0
    %v131 = vadd.f32 %v46, %v130
    %v132 = vpop.f32.mrb[0].mxu0
    %v133 = vpop.f32.mrb[0].mxu0
    %v134 = vadd.f32 %v46, %v133
    %v135 = vpop.f32.mrb[0].mxu0
    %136 = vdwg.mxu0
    %v137 = vmax.f32 %v131, 0.0
    %v138 = vmax.f32 %v134, 0.0
    %v139 = vpack.c.bf16 %v138, %v137
    %v140 = vld [vmem:[%s2] sm:$0xf]
    %v141 = vld [vmem:[%s2 + $0x4] sm:$0xf]
    %v142 = vld [vmem:[%s2 + $0x8] sm:$0xf]
    %v143 = vld [vmem:[%s2 + $0xc] sm:$0xf]
    %v144 = vld [vmem:[%s2 + $0x10] sm:$0xf]
    %v145 = vld [vmem:[%s2 + $0x14] sm:$0xf]
    %v146 = vld [vmem:[%s2 + $0x18] sm:$0xf]
    %v147 = vld [vmem:[%s2 + $0x1c] sm:$0xf]
    %v148 = vld [vmem:[%s3] sm:$0x1]
    %v150 = vlaneseq
    %v151 = vshrl.u32 %v150, 7
    %v152 = vsub.s32 0, %v151
    %v153 = vrot.slane %v148, %v152
    %v163 = vunpack.c.l.b16 %v140
    %v164 = vunpack.c.l.b16 %v141
    %v165 = vunpack.c.l.b16 %v142
    %v166 = vunpack.c.l.b16 %v143
    %v167 = vunpack.c.l.b16 %v144
    %v168 = vunpack.c.l.b16 %v145
    %v169 = vunpack.c.l.b16 %v146
    %v170 = vunpack.c.l.b16 %v147
    %v171 = vpack.c.b16 %v164, %v163
    %v172 = vpack.c.b16 %v166, %v165
    %v173 = vpack.c.b16 %v168, %v167
    %v174 = vpack.c.b16 %v170, %v169
    %vm179 = vcmask 523264
    %v181 = vsel %vm179, %v139, 0
    %183 = vmatprep.subr.bf16.mxu0 0
    %184 = vmatpush1.bf16.msra.mxu0 %v171
    %185 = vmatprep.subr.bf16.mxu0 0
    %186 = vmatpush1.bf16.msra.mxu0 %v172
    %187 = vmatprep.subr.bf16.mxu0 0
    %188 = vmatpush1.bf16.msra.mxu0 %v173
    %189 = vmatprep.subr.bf16.mxu0 0
    %190 = vmatpush1.bf16.msra.mxu0 %v174
    %191 = vmatprep.subr.bf16.mxu0 0
    %192 = vmatpush1.bf16.msra.mxu0 0
    %193 = vmatprep.subr.bf16.mxu0 0
    %194 = vmatpush1.bf16.msra.mxu0 0
    %195 = vmatprep.subr.bf16.mxu0 0
    %196 = vmatpush1.bf16.msra.mxu0 0
    %197 = vmatprep.subr.bf16.mxu0 0
    %198 = vmatpush1.bf16.msra.mxu0 0
    %199 = vmatprep.subr.bf16.mxu0 0
    %200 = vmatpush1.bf16.msra.mxu0 0
    %201 = vmatprep.subr.bf16.mxu0 0
    %202 = vmatpush1.bf16.msra.mxu0 0
    %203 = vmatprep.subr.bf16.mxu0 0
    %204 = vmatpush1.bf16.msra.mxu0 0
    %205 = vmatprep.subr.bf16.mxu0 0
    %206 = vmatpush1.bf16.msra.mxu0 0
    %207 = vmatprep.subr.bf16.mxu0 0
    %208 = vmatpush1.bf16.msra.mxu0 0
    %209 = vmatprep.subr.bf16.mxu0 0
    %210 = vmatpush1.bf16.msra.mxu0 0
    %211 = vmatprep.subr.bf16.mxu0 0
    %212 = vmatpush1.bf16.msra.mxu0 0
    %213 = vmatprep.subr.bf16.mxu0 0
    %214 = vmatpush1.bf16.msra.mxu0 0
    %215 = vmatprep.mubr.bf16.mxu0 0
    %216 = vmatmul.mubr.bf16.gmra.mrb[0].mxu0 %v181
    %v217 = vpop.f32.mrb[0].mxu0
    %v218 = vadd.f32 %v153, %v217
    %v219 = vpop.f32.mrb[0].mxu0
    %v220 = vpop.f32.mrb[0].mxu0
    %v221 = vadd.f32 %v153, %v220
    %v222 = vpop.f32.mrb[0].mxu0
    %223 = vdwg.mxu0
    %v224 = vmax.f32 %v218, 0.0
    %v225 = vmax.f32 %v221, 0.0
    %vm226 = vcmask 261120
    %227 = vst.msk [vmem:[#allocation2] sm:$0xff] %vm226, %v224
    %228 = vst.msk [vmem:[#allocation2 + $0x8] sm:$0xff] %vm226, %v225
    // Predicated region
    $region22: #{tpu_custom_call.1} parent=1 // pred_check
      _
    $region23: #{tpu_custom_call.1} parent=1 // pred_check_branch
      %230 = sbr.rel (0) target = $region25
    $region24: #{tpu_custom_call.1} parent=1 // pred_region
      %s232 = ssub.s32 256, 256
      %233 = vsyncadd [#allocation3], %s232
      %s234 = sshll.u32 [#allocation2], 4
      %s235 = int_to_ptr.vmem [resolvable:$true] %s234
      %240 = dma.vmem_to_hbm [thread:$0]  %s235, 256, %s5, [#allocation3], 128, 128, 8
    $region25: #{tpu_custom_call.1} parent=1 // pred_fallthru
      _
    // Predicated region
    $region26: #{tpu_custom_call.1} parent=1 // pred_check
      _
    $region27: #{tpu_custom_call.1} parent=1 // pred_check_branch
      %242 = sbr.rel (0) target = $region29
    $region28: #{tpu_custom_call.1} parent=1 // pred_region
      %243 = dma.done [#allocation3], 256
    $region29: #{tpu_custom_call.1} parent=1 // pred_fallthru
      _
    %244 = vsyncpa [#allocation3], 1

</llo_original>
